<compile_context>
chip_gen: v6e
topology: v6e:2x2x1
jax: 0.10.0
libtpu: 0.0.40
codegen_flags: <defaults>
</compile_context>

<pallas_src>
import jax
import jax.numpy as jnp
from jax.experimental import pallas as pl
from jax.experimental.pallas import tpu as pltpu

EMBED_DIM = 32
HIDDEN_DIM = 64
OUT_DIM = 48

LANE = 128  # lane-dense padded width for all feature dims


def _gelu(x):
    # tanh-approx GELU (== torch.nn.GELU(approximate='tanh')); gelu(0) == 0, so the
    # zero-padded lanes stay exactly zero through the head.  The kernel and the
    # pure-JAX reference below use the same approximation.
    return 0.5 * x * (1.0 + jnp.tanh(0.7978845608028654 * (x + 0.044715 * x * x * x)))


# ---------------------------------------------------------------------------
# Fused kernel: for each resolution group g,
#   feat_g = x_g @ Wbig_g + bb      (mean-pool + backbone Linear fused into one MXU matmul)
#   out_g  = GELU(feat_g @ w1 + b1) @ w2 + b2
# Everything runs in a single grid step; all stores are full-block and 128-lane dense.
# ---------------------------------------------------------------------------
def _make_kernel(n_groups):
    def kernel(*refs):
        x_refs = refs[:n_groups]                      # [n_g, C*S_g] per group
        w_refs = refs[n_groups:2 * n_groups]          # [C*S_g, 128] per group
        bb_ref, w1_ref, b1_ref, w2_ref, b2_ref = refs[2 * n_groups:2 * n_groups + 5]
        o_refs = refs[2 * n_groups + 5:]              # [n_g, 128] per group

        for g in range(n_groups):
            # Backbone: spatial mean + Linear, fused into one K = C*S matmul (MXU).
            feat = jnp.dot(x_refs[g][...], w_refs[g][...],
                           preferred_element_type=jnp.float32) + bb_ref[...]
            # Head MLP (per-row op, so per-group == head on the stacked features).
            h = _gelu(jnp.dot(feat, w1_ref[...],
                              preferred_element_type=jnp.float32) + b1_ref[...])
            out = jnp.dot(h, w2_ref[...],
                          preferred_element_type=jnp.float32) + b2_ref[...]
            o_refs[g][...] = out.astype(o_refs[g].dtype)   # full-block lane-dense store

    return kernel


def fused_forward(group_xs, group_ws, head):
    n_groups = len(group_xs)
    group_rows = [int(g.shape[0]) for g in group_xs]
    n_total = sum(group_rows)

    operands = list(group_xs) + list(group_ws) + list(head)
    # All operands are 2-D; every block is the full array (no (8,128) divisibility
    # requirement when block_shape == array shape), index is constant for grid=(1,).
    in_specs = [pl.BlockSpec(op.shape, lambda i: (0, 0)) for op in operands]

    out_shape = tuple(jax.ShapeDtypeStruct((n, LANE), jnp.float32) for n in group_rows)
    out_specs = tuple(pl.BlockSpec((n, LANE), lambda i: (0, 0)) for n in group_rows)

    flops = 0
    for gx in group_xs:
        flops += 2 * gx.shape[0] * gx.shape[1] * LANE        # fused pool + backbone matmul
    flops += 2 * n_total * LANE * LANE * 2                    # head: two 128x128 matmuls
    bytes_accessed = 4 * (sum(int(op.size) for op in operands) + n_total * LANE)

    return pl.pallas_call(
        _make_kernel(n_groups),
        out_shape=out_shape,
        grid=(1,),  # one big block at this size; tile rows (128/256) for real batches
        in_specs=in_specs,
        out_specs=out_specs,
        compiler_params=pltpu.CompilerParams(
            # Single step -> "arbitrary"; use "parallel" once the row axis is tiled.
            dimension_semantics=("arbitrary",),
            vmem_limit_bytes=32 * 1024 * 1024,  # safe on v5e/v6e/v7x; usage here < 1 MiB
        ),
        cost_estimate=pl.CostEstimate(
            flops=flops,
            transcendentals=n_total * LANE,  # tanh in GELU
            bytes_accessed=bytes_accessed,
        ),
    )(*operands)


# ---------------------------------------------------------------------------
# MultiCropWrapper.forward semantics.  Grouping glue is static -> trace-time Python.
# ---------------------------------------------------------------------------
def multi_crop_forward(x, params):
    if not isinstance(x, (list, tuple)):
        x = [x]

    # torch.unique_consecutive(..., return_counts=True) + cumsum on the last-dim
    # resolution: consecutive runs of equal resolution form the groups.
    resolutions = [int(inp.shape[-1]) for inp in x]
    groups = []
    start = 0
    for i in range(1, len(x) + 1):
        if i == len(x) or resolutions[i] != resolutions[start]:
            groups.append((start, i))
            start = i

    # Per group: flatten each crop NCHW -> [B, C*H*W] (metadata-only reshape), then
    # concatenate along batch (same torch.cat the original module performs).  No
    # zero padding of spatial or channels is introduced.
    group_xs, group_ws, group_rows = [], [], []
    for (s0, s1) in groups:
        crops = x[s0:s1]
        spatial = int(crops[0].shape[-2]) * int(crops[0].shape[-1])
        flat = jnp.concatenate([c.reshape(c.shape[0], -1) for c in crops], axis=0)
        group_xs.append(flat.astype(jnp.float32))
        group_rows.append(int(flat.shape[0]))
        # Fold mean-pool + backbone Linear into one MXU weight (precompute per call;
        # in production this would be cached per resolution):
        #   Wbig[c*S + s, e] = wb[c, e] / S   ->   flat @ Wbig == mean_pool(x) @ wb
        wbig = jnp.repeat(params["wb"], spatial, axis=0) / float(spatial)
        group_ws.append(jnp.pad(wbig, ((0, 0), (0, LANE - EMBED_DIM))))

    # Head parameters zero-padded once to 128 lanes (lane-dense MXU operands).
    head = (
        jnp.pad(params["bb"], ((0, LANE - EMBED_DIM),)).reshape(1, LANE),
        jnp.pad(params["w1"], ((0, LANE - EMBED_DIM), (0, LANE - HIDDEN_DIM))),
        jnp.pad(params["b1"], ((0, LANE - HIDDEN_DIM),)).reshape(1, LANE),
        jnp.pad(params["w2"], ((0, LANE - HIDDEN_DIM), (0, LANE - OUT_DIM))),
        jnp.pad(params["b2"], ((0, LANE - OUT_DIM),)).reshape(1, LANE),
    )

    outs = fused_forward(group_xs, group_ws, head)
    # Tiny lane slice + row concat (a few hundred floats): preserves the original
    # crop/row ordering (global crops first, then local, as in the input list).
    return jnp.concatenate([o[:, :OUT_DIM] for o in outs], axis=0)


# ---------------------------------------------------------------------------
# Parameters (real sizes; padding / folding is done per call in the wrapper).
# ---------------------------------------------------------------------------
def init_params(key, channels):
    k1, k2, k3, k4, k5, k6 = jax.random.split(key, 6)
    return {
        "wb": 0.02 * jax.random.normal(k1, (channels, EMBED_DIM), jnp.float32),
        "bb": 0.02 * jax.random.normal(k4, (EMBED_DIM,), jnp.float32),
        "w1": 0.02 * jax.random.normal(k2, (EMBED_DIM, HIDDEN_DIM), jnp.float32),
        "b1": 0.02 * jax.random.normal(k5, (HIDDEN_DIM,), jnp.float32),
        "w2": 0.02 * jax.random.normal(k3, (HIDDEN_DIM, OUT_DIM), jnp.float32),
        "b2": 0.02 * jax.random.normal(k6, (OUT_DIM,), jnp.float32),
    }


if __name__ == "__main__":
    key = jax.random.PRNGKey(0)
    kp, kg1, kg2, kl1, kl2, kl3 = jax.random.split(key, 6)

    batch, channels = 2, 4
    # DINO-style multi-crop list: 2 global crops (16x16) + 3 local crops (8x8).
    x_list = [
        jax.random.normal(kg1, (batch, channels, 16, 16), jnp.float32),
        jax.random.normal(kg2, (batch, channels, 16, 16), jnp.float32),
        jax.random.normal(kl1, (batch, channels, 8, 8), jnp.float32),
        jax.random.normal(kl2, (batch, channels, 8, 8), jnp.float32),
        jax.random.normal(kl3, (batch, channels, 8, 8), jnp.float32),
    ]

    params = init_params(kp, channels)

    out = multi_crop_forward(x_list, params)
    out = jax.block_until_ready(out)
    assert out.shape == (batch * len(x_list), OUT_DIM), out.shape

    # Pure-JAX reference reproducing the original per-group forward exactly.
    def ref_forward(x_list, p):
        feats = []
        for inp in x_list:
            pooled = jnp.mean(inp.reshape(inp.shape[0], inp.shape[1], -1), axis=-1)
            feats.append(pooled @ p["wb"] + p["bb"])
        f = jnp.concatenate(feats, axis=0)
        h = _gelu(f @ p["w1"] + p["b1"])
        return h @ p["w2"] + p["b2"]

    ref = ref_forward(x_list, params)
    assert jnp.allclose(out, ref, atol=1e-4, rtol=1e-4), float(jnp.max(jnp.abs(out - ref)))

    print("KERNEL_OK")
</pallas_src>

<mosaic_0001>
module attributes {stable_mosaic.version = 11 : i64} {
  func.func @kernel(%arg0: i32, %arg1: memref<4x1024xf32, #tpu.memory_space<vmem>>, %arg2: memref<6x256xf32, #tpu.memory_space<vmem>>, %arg3: memref<1024x128xf32, #tpu.memory_space<vmem>>, %arg4: memref<256x128xf32, #tpu.memory_space<vmem>>, %arg5: memref<1x128xf32, #tpu.memory_space<vmem>>, %arg6: memref<128x128xf32, #tpu.memory_space<vmem>>, %arg7: memref<1x128xf32, #tpu.memory_space<vmem>>, %arg8: memref<128x128xf32, #tpu.memory_space<vmem>>, %arg9: memref<1x128xf32, #tpu.memory_space<vmem>>, %arg10: memref<4x128xf32, #tpu.memory_space<vmem>>, %arg11: memref<6x128xf32, #tpu.memory_space<vmem>>) attributes {dimension_semantics = [#tpu.dimension_semantics<arbitrary>], iteration_bounds = array<i64: 1>, scalar_prefetch = 0 : i64, scratch_operands = 0 : i64, tpu.core_type = #tpu.core_type<tc>, window_params = [{pipeline_mode = #tpu.pipeline_mode<synchronous>, transform_indices = @transform_0, window_bounds = array<i64: 4, 1024>}, {pipeline_mode = #tpu.pipeline_mode<synchronous>, transform_indices = @transform_1, window_bounds = array<i64: 6, 256>}, {pipeline_mode = #tpu.pipeline_mode<synchronous>, transform_indices = @transform_2, window_bounds = array<i64: 1024, 128>}, {pipeline_mode = #tpu.pipeline_mode<synchronous>, transform_indices = @transform_3, window_bounds = array<i64: 256, 128>}, {pipeline_mode = #tpu.pipeline_mode<synchronous>, transform_indices = @transform_4, window_bounds = array<i64: 1, 128>}, {pipeline_mode = #tpu.pipeline_mode<synchronous>, transform_indices = @transform_5, window_bounds = array<i64: 128, 128>}, {pipeline_mode = #tpu.pipeline_mode<synchronous>, transform_indices = @transform_6, window_bounds = array<i64: 1, 128>}, {pipeline_mode = #tpu.pipeline_mode<synchronous>, transform_indices = @transform_7, window_bounds = array<i64: 128, 128>}, {pipeline_mode = #tpu.pipeline_mode<synchronous>, transform_indices = @transform_8, window_bounds = array<i64: 1, 128>}, {pipeline_mode = #tpu.pipeline_mode<synchronous>, transform_indices = @transform_9, window_bounds = array<i64: 4, 128>}, {pipeline_mode = #tpu.pipeline_mode<synchronous>, transform_indices = @transform_10, window_bounds = array<i64: 6, 128>}]} {
    %c0 = arith.constant 0 : index
    %c0_0 = arith.constant 0 : index
    %0 = vector.load %arg1[%c0, %c0_0] : memref<4x1024xf32, #tpu.memory_space<vmem>>, vector<4x1024xf32>
    %c0_1 = arith.constant 0 : index
    %c0_2 = arith.constant 0 : index
    %1 = vector.load %arg3[%c0_1, %c0_2] : memref<1024x128xf32, #tpu.memory_space<vmem>>, vector<1024x128xf32>
    %cst = arith.constant dense<0.000000e+00> : vector<4x128xf32>
    %2 = tpu.matmul %0, %1, %cst {dimension_numbers = #tpu.dot_dimension_numbers<[1], [0], [0], [1], [0, 0, 1, 1], [], []>} : vector<4x1024xf32>, vector<1024x128xf32>, vector<4x128xf32> -> vector<4x128xf32>
    %c0_3 = arith.constant 0 : index
    %c0_4 = arith.constant 0 : index
    %3 = vector.load %arg5[%c0_3, %c0_4] : memref<1x128xf32, #tpu.memory_space<vmem>>, vector<1x128xf32>
    %4 = vector.broadcast %3 : vector<1x128xf32> to vector<4x128xf32>
    %5 = arith.addf %2, %4 : vector<4x128xf32>
    %c0_5 = arith.constant 0 : index
    %c0_6 = arith.constant 0 : index
    %6 = vector.load %arg6[%c0_5, %c0_6] : memref<128x128xf32, #tpu.memory_space<vmem>>, vector<128x128xf32>
    %cst_7 = arith.constant dense<0.000000e+00> : vector<4x128xf32>
    %7 = tpu.matmul %5, %6, %cst_7 {dimension_numbers = #tpu.dot_dimension_numbers<[1], [0], [0], [1], [0, 0, 1, 1], [], []>} : vector<4x128xf32>, vector<128x128xf32>, vector<4x128xf32> -> vector<4x128xf32>
    %c0_8 = arith.constant 0 : index
    %c0_9 = arith.constant 0 : index
    %8 = vector.load %arg7[%c0_8, %c0_9] : memref<1x128xf32, #tpu.memory_space<vmem>>, vector<1x128xf32>
    %9 = vector.broadcast %8 : vector<1x128xf32> to vector<4x128xf32>
    %10 = arith.addf %7, %9 : vector<4x128xf32>
    %cst_10 = arith.constant 5.000000e-01 : f32
    %11 = vector.broadcast %cst_10 : f32 to vector<4x128xf32>
    %12 = arith.mulf %11, %10 : vector<4x128xf32>
    %cst_11 = arith.constant 4.471500e-02 : f32
    %13 = vector.broadcast %cst_11 : f32 to vector<4x128xf32>
    %14 = arith.mulf %13, %10 : vector<4x128xf32>
    %15 = arith.mulf %14, %10 : vector<4x128xf32>
    %16 = arith.mulf %15, %10 : vector<4x128xf32>
    %17 = arith.addf %10, %16 : vector<4x128xf32>
    %cst_12 = arith.constant 0.797884583 : f32
    %18 = vector.broadcast %cst_12 : f32 to vector<4x128xf32>
    %19 = arith.mulf %18, %17 : vector<4x128xf32>
    %20 = math.tanh %19 : vector<4x128xf32>
    %cst_13 = arith.constant 1.000000e+00 : f32
    %21 = vector.broadcast %cst_13 : f32 to vector<4x128xf32>
    %22 = arith.addf %21, %20 : vector<4x128xf32>
    %23 = arith.mulf %12, %22 : vector<4x128xf32>
    %c0_14 = arith.constant 0 : index
    %c0_15 = arith.constant 0 : index
    %24 = vector.load %arg8[%c0_14, %c0_15] : memref<128x128xf32, #tpu.memory_space<vmem>>, vector<128x128xf32>
    %cst_16 = arith.constant dense<0.000000e+00> : vector<4x128xf32>
    %25 = tpu.matmul %23, %24, %cst_16 {dimension_numbers = #tpu.dot_dimension_numbers<[1], [0], [0], [1], [0, 0, 1, 1], [], []>} : vector<4x128xf32>, vector<128x128xf32>, vector<4x128xf32> -> vector<4x128xf32>
    %c0_17 = arith.constant 0 : index
    %c0_18 = arith.constant 0 : index
    %26 = vector.load %arg9[%c0_17, %c0_18] : memref<1x128xf32, #tpu.memory_space<vmem>>, vector<1x128xf32>
    %27 = vector.broadcast %26 : vector<1x128xf32> to vector<4x128xf32>
    %28 = arith.addf %25, %27 : vector<4x128xf32>
    %c0_19 = arith.constant 0 : index
    %c0_20 = arith.constant 0 : index
    %29 = vector.load %arg10[%c0_19, %c0_20] : memref<4x128xf32, #tpu.memory_space<vmem>>, vector<4x128xf32>
    tpu.vector_store %arg10[%c0_19, %c0_20], %28 {strides = array<i32>} : memref<4x128xf32, #tpu.memory_space<vmem>>, vector<4x128xf32>,
    %c0_21 = arith.constant 0 : index
    %c0_22 = arith.constant 0 : index
    %30 = vector.load %arg2[%c0_21, %c0_22] : memref<6x256xf32, #tpu.memory_space<vmem>>, vector<6x256xf32>
    %c0_23 = arith.constant 0 : index
    %c0_24 = arith.constant 0 : index
    %31 = vector.load %arg4[%c0_23, %c0_24] : memref<256x128xf32, #tpu.memory_space<vmem>>, vector<256x128xf32>
    %cst_25 = arith.constant dense<0.000000e+00> : vector<6x128xf32>
    %32 = tpu.matmul %30, %31, %cst_25 {dimension_numbers = #tpu.dot_dimension_numbers<[1], [0], [0], [1], [0, 0, 1, 1], [], []>} : vector<6x256xf32>, vector<256x128xf32>, vector<6x128xf32> -> vector<6x128xf32>
    %c0_26 = arith.constant 0 : index
    %c0_27 = arith.constant 0 : index
    %33 = vector.load %arg5[%c0_26, %c0_27] : memref<1x128xf32, #tpu.memory_space<vmem>>, vector<1x128xf32>
    %34 = vector.broadcast %33 : vector<1x128xf32> to vector<6x128xf32>
    %35 = arith.addf %32, %34 : vector<6x128xf32>
    %c0_28 = arith.constant 0 : index
    %c0_29 = arith.constant 0 : index
    %36 = vector.load %arg6[%c0_28, %c0_29] : memref<128x128xf32, #tpu.memory_space<vmem>>, vector<128x128xf32>
    %cst_30 = arith.constant dense<0.000000e+00> : vector<6x128xf32>
    %37 = tpu.matmul %35, %36, %cst_30 {dimension_numbers = #tpu.dot_dimension_numbers<[1], [0], [0], [1], [0, 0, 1, 1], [], []>} : vector<6x128xf32>, vector<128x128xf32>, vector<6x128xf32> -> vector<6x128xf32>
    %c0_31 = arith.constant 0 : index
    %c0_32 = arith.constant 0 : index
    %38 = vector.load %arg7[%c0_31, %c0_32] : memref<1x128xf32, #tpu.memory_space<vmem>>, vector<1x128xf32>
    %39 = vector.broadcast %38 : vector<1x128xf32> to vector<6x128xf32>
    %40 = arith.addf %37, %39 : vector<6x128xf32>
    %cst_33 = arith.constant 5.000000e-01 : f32
    %41 = vector.broadcast %cst_33 : f32 to vector<6x128xf32>
    %42 = arith.mulf %41, %40 : vector<6x128xf32>
    %cst_34 = arith.constant 4.471500e-02 : f32
    %43 = vector.broadcast %cst_34 : f32 to vector<6x128xf32>
    %44 = arith.mulf %43, %40 : vector<6x128xf32>
    %45 = arith.mulf %44, %40 : vector<6x128xf32>
    %46 = arith.mulf %45, %40 : vector<6x128xf32>
    %47 = arith.addf %40, %46 : vector<6x128xf32>
    %cst_35 = arith.constant 0.797884583 : f32
    %48 = vector.broadcast %cst_35 : f32 to vector<6x128xf32>
    %49 = arith.mulf %48, %47 : vector<6x128xf32>
    %50 = math.tanh %49 : vector<6x128xf32>
    %cst_36 = arith.constant 1.000000e+00 : f32
    %51 = vector.broadcast %cst_36 : f32 to vector<6x128xf32>
    %52 = arith.addf %51, %50 : vector<6x128xf32>
    %53 = arith.mulf %42, %52 : vector<6x128xf32>
    %c0_37 = arith.constant 0 : index
    %c0_38 = arith.constant 0 : index
    %54 = vector.load %arg8[%c0_37, %c0_38] : memref<128x128xf32, #tpu.memory_space<vmem>>, vector<128x128xf32>
    %cst_39 = arith.constant dense<0.000000e+00> : vector<6x128xf32>
    %55 = tpu.matmul %53, %54, %cst_39 {dimension_numbers = #tpu.dot_dimension_numbers<[1], [0], [0], [1], [0, 0, 1, 1], [], []>} : vector<6x128xf32>, vector<128x128xf32>, vector<6x128xf32> -> vector<6x128xf32>
    %c0_40 = arith.constant 0 : index
    %c0_41 = arith.constant 0 : index
    %56 = vector.load %arg9[%c0_40, %c0_41] : memref<1x128xf32, #tpu.memory_space<vmem>>, vector<1x128xf32>
    %57 = vector.broadcast %56 : vector<1x128xf32> to vector<6x128xf32>
    %58 = arith.addf %55, %57 : vector<6x128xf32>
    %c0_42 = arith.constant 0 : index
    %c0_43 = arith.constant 0 : index
    %59 = vector.load %arg11[%c0_42, %c0_43] : memref<6x128xf32, #tpu.memory_space<vmem>>, vector<6x128xf32>
    tpu.vector_store %arg11[%c0_42, %c0_43], %58 {strides = array<i32>} : memref<6x128xf32, #tpu.memory_space<vmem>>, vector<6x128xf32>,
    return
  }
  func.func @transform_0(%arg0: i32) -> (i32, i32) {
    %c0_i32 = arith.constant 0 : i32
    %c0_i32_0 = arith.constant 0 : i32
    %c0_i32_1 = arith.constant 0 : i32
    return %c0_i32, %c0_i32_0 : i32, i32
  }
  func.func @transform_1(%arg0: i32) -> (i32, i32) {
    %c0_i32 = arith.constant 0 : i32
    %c0_i32_0 = arith.constant 0 : i32
    %c0_i32_1 = arith.constant 0 : i32
    return %c0_i32, %c0_i32_0 : i32, i32
  }
  func.func @transform_2(%arg0: i32) -> (i32, i32) {
    %c0_i32 = arith.constant 0 : i32
    %c0_i32_0 = arith.constant 0 : i32
    %c0_i32_1 = arith.constant 0 : i32
    return %c0_i32, %c0_i32_0 : i32, i32
  }
  func.func @transform_3(%arg0: i32) -> (i32, i32) {
    %c0_i32 = arith.constant 0 : i32
    %c0_i32_0 = arith.constant 0 : i32
    %c0_i32_1 = arith.constant 0 : i32
    return %c0_i32, %c0_i32_0 : i32, i32
  }
  func.func @transform_4(%arg0: i32) -> (i32, i32) {
    %c0_i32 = arith.constant 0 : i32
    %c0_i32_0 = arith.constant 0 : i32
    %c0_i32_1 = arith.constant 0 : i32
    return %c0_i32, %c0_i32_0 : i32, i32
  }
  func.func @transform_5(%arg0: i32) -> (i32, i32) {
    %c0_i32 = arith.constant 0 : i32
    %c0_i32_0 = arith.constant 0 : i32
    %c0_i32_1 = arith.constant 0 : i32
    return %c0_i32, %c0_i32_0 : i32, i32
  }
  func.func @transform_6(%arg0: i32) -> (i32, i32) {
    %c0_i32 = arith.constant 0 : i32
    %c0_i32_0 = arith.constant 0 : i32
    %c0_i32_1 = arith.constant 0 : i32
    return %c0_i32, %c0_i32_0 : i32, i32
  }
  func.func @transform_7(%arg0: i32) -> (i32, i32) {
    %c0_i32 = arith.constant 0 : i32
    %c0_i32_0 = arith.constant 0 : i32
    %c0_i32_1 = arith.constant 0 : i32
    return %c0_i32, %c0_i32_0 : i32, i32
  }
  func.func @transform_8(%arg0: i32) -> (i32, i32) {
    %c0_i32 = arith.constant 0 : i32
    %c0_i32_0 = arith.constant 0 : i32
    %c0_i32_1 = arith.constant 0 : i32
    return %c0_i32, %c0_i32_0 : i32, i32
  }
  func.func @transform_9(%arg0: i32) -> (i32, i32) {
    %c0_i32 = arith.constant 0 : i32
    %c0_i32_0 = arith.constant 0 : i32
    %c0_i32_1 = arith.constant 0 : i32
    return %c0_i32, %c0_i32_0 : i32, i32
  }
  func.func @transform_10(%arg0: i32) -> (i32, i32) {
    %c0_i32 = arith.constant 0 : i32
    %c0_i32_0 = arith.constant 0 : i32
    %c0_i32_1 = arith.constant 0 : i32
    return %c0_i32, %c0_i32_0 : i32, i32
  }
}

</mosaic_0001>

<llo_original>
// kernel: tpu_custom_call.1
$region0: #{tpu_custom_call.1}
  #allocation0 [shape = 'u32[]', space=smem, size = 0x4, offset = 0x4, fixed_abs, tag = 'smem constant byte address 0x4 - core index']
  #allocation1 [shape = 'u32[144,128]{1,0:T(1,128)}', space=vmem, size = 0x12000, scoped, tag = 'internal scratch']
  %s0 = inlined_call_operand.hbm [shape: f32[4,1024], index: 0, kind: input, shape index: {}]
  %s1 = inlined_call_operand.hbm [shape: f32[6,256], index: 1, kind: input, shape index: {}]
  %s2 = inlined_call_operand.hbm [shape: f32[1024,128], index: 2, kind: input, shape index: {}]
  %s3 = inlined_call_operand.hbm [shape: f32[256,128], index: 3, kind: input, shape index: {}]
  %s4 = inlined_call_operand.vmem [shape: f32[1,128], index: 4, kind: input, shape index: {}]
  %s5 = inlined_call_operand.hbm [shape: f32[128,128], index: 5, kind: input, shape index: {}]
  %s6 = inlined_call_operand.vmem [shape: f32[1,128], index: 6, kind: input, shape index: {}]
  %s7 = inlined_call_operand.hbm [shape: f32[128,128], index: 7, kind: input, shape index: {}]
  %s8 = inlined_call_operand.vmem [shape: f32[1,128], index: 8, kind: input, shape index: {}]
  %s9 = inlined_call_operand.hbm [shape: f32[4,128], index: 9, kind: output, shape index: {0}]
  %s10 = inlined_call_operand.hbm [shape: f32[6,128], index: 10, kind: output, shape index: {1}]
  %11 = xla_tuple %s9, %s10
  %s12 = sld [smem:[#allocation0]]
  $region78: #{tpu_custom_call.1} parent=0
    _
  %s14 = ssub.s32 1, %s12
  %s15 = scalar_select 0, %s14, %s12
  $region1: #{tpu_custom_call.1} parent=0
    #allocation2 [shape = 'u8[16384]{0}', space=vmem, size = 0x4000, scoped, tag = 'input window, operand 0, single buffered']
    #allocation3 [shape = 's32[1]{0}', space=sflag, size = 0x4, scoped, tag = 'scoped memory for tpu_custom_call.1']
    #allocation4 [shape = 's32[1]{0}', space=sflag, size = 0x4, scoped, tag = 'scoped memory for tpu_custom_call.1']
    #allocation5 [shape = 'u8[8192]{0}', space=vmem, size = 0x2000, scoped, tag = 'input window, operand 1, single buffered']
    #allocation6 [shape = 's32[1]{0}', space=sflag, size = 0x4, scoped, tag = 'scoped memory for tpu_custom_call.1']
    #allocation7 [shape = 'u8[524288]{0}', space=vmem, size = 0x80000, scoped, tag = 'input window, operand 2, single buffered']
    #allocation8 [shape = 'u8[131072]{0}', space=vmem, size = 0x20000, scoped, tag = 'input window, operand 3, single buffered']
    #allocation9 [shape = 's32[1]{0}', space=sflag, size = 0x4, scoped, tag = 'scoped memory for tpu_custom_call.1']
    #allocation10 [shape = 'u8[65536]{0}', space=vmem, size = 0x10000, scoped, tag = 'input window, operand 5, single buffered']
    #allocation11 [shape = 'u8[65536]{0}', space=vmem, size = 0x10000, scoped, tag = 'input window, operand 7, single buffered']
    #allocation12 [shape = 's32[1]{0}', space=sflag, size = 0x4, scoped, tag = 'scoped memory for tpu_custom_call.1']
    #allocation13 [shape = 'u8[2048]{0}', space=vmem, size = 0x800, scoped, tag = 'output window, operand 0, single buffered']
    #allocation14 [shape = 'u8[4096]{0}', space=vmem, size = 0x1000, scoped, tag = 'output window, operand 1, single buffered']
    #allocation15 [shape = 's32[1]{0}', space=sflag, size = 0x4, scoped, tag = 'scoped memory for tpu_custom_call.1']
    %16 = vsyncpa [#allocation3], 0
    %17 = vsyncpa [#allocation6], 0
    %18 = vsyncpa [#allocation9], 0
    %19 = vsyncpa [#allocation12], 0
    %20 = vsyncpa [#allocation4], 0
    %21 = vsyncpa [#allocation15], 0
    // Predicated region
    $region2: #{tpu_custom_call.1} parent=1 // pred_check
      _
    $region3: #{tpu_custom_call.1} parent=1 // pred_check_branch
      %23 = sbr.rel (0) target = $region5
    $region4: #{tpu_custom_call.1} parent=1 // pred_region
      %s25 = ssub.s32 512, 512
      %26 = vsyncadd [#allocation3], %s25
      %s28 = sshll.u32 [#allocation2], 4
      %s29 = int_to_ptr.vmem [resolvable:$true] %s28
      %31 = dma.hbm_to_vmem [thread:$0]  %s0, 512, %s29, [#allocation3]
    $region5: #{tpu_custom_call.1} parent=1 // pred_fallthru
      _
    // Predicated region
    $region6: #{tpu_custom_call.1} parent=1 // pred_check
      _
    $region7: #{tpu_custom_call.1} parent=1 // pred_check_branch
      %33 = sbr.rel (0) target = $region9
    $region8: #{tpu_custom_call.1} parent=1 // pred_region
      %s35 = ssub.s32 256, 256
      %36 = vsyncadd [#allocation6], %s35
      %s38 = sshll.u32 [#allocation5], 4
      %s39 = int_to_ptr.vmem [resolvable:$true] %s38
      %41 = dma.hbm_to_vmem [thread:$0]  %s1, 256, %s39, [#allocation6]
    $region9: #{tpu_custom_call.1} parent=1 // pred_fallthru
      _
    // Predicated region
    $region10: #{tpu_custom_call.1} parent=1 // pred_check
      _
    $region11: #{tpu_custom_call.1} parent=1 // pred_check_branch
      %43 = sbr.rel (0) target = $region13
    $region12: #{tpu_custom_call.1} parent=1 // pred_region
      %s45 = ssub.s32 16384, 16384
      %46 = vsyncadd [#allocation6], %s45
      %s47 = sshll.u32 [#allocation7], 4
      %s48 = int_to_ptr.vmem [resolvable:$true] %s47
      %53 = dma.hbm_to_vmem [thread:$0]  %s2, 16384, %s48, [#allocation6], 128, 128, 8
    $region13: #{tpu_custom_call.1} parent=1 // pred_fallthru
      _
    // Predicated region
    $region14: #{tpu_custom_call.1} parent=1 // pred_check
      _
    $region15: #{tpu_custom_call.1} parent=1 // pred_check_branch
      %55 = sbr.rel (0) target = $region17
    $region16: #{tpu_custom_call.1} parent=1 // pred_region
      %s57 = ssub.s32 4096, 4096
      %58 = vsyncadd [#allocation9], %s57
      %s59 = sshll.u32 [#allocation8], 4
      %s60 = int_to_ptr.vmem [resolvable:$true] %s59
      %65 = dma.hbm_to_vmem [thread:$0]  %s3, 4096, %s60, [#allocation9], 128, 128, 8
    $region17: #{tpu_custom_call.1} parent=1 // pred_fallthru
      _
    // Predicated region
    $region18: #{tpu_custom_call.1} parent=1 // pred_check
      _
    $region19: #{tpu_custom_call.1} parent=1 // pred_check_branch
      %67 = sbr.rel (0) target = $region21
    $region20: #{tpu_custom_call.1} parent=1 // pred_region
      _
    $region21: #{tpu_custom_call.1} parent=1 // pred_fallthru
      _
    // Predicated region
    $region22: #{tpu_custom_call.1} parent=1 // pred_check
      _
    $region23: #{tpu_custom_call.1} parent=1 // pred_check_branch
      %69 = sbr.rel (0) target = $region25
    $region24: #{tpu_custom_call.1} parent=1 // pred_region
      %s71 = ssub.s32 2048, 2048
      %72 = vsyncadd [#allocation9], %s71
      %s73 = sshll.u32 [#allocation10], 4
      %s74 = int_to_ptr.vmem [resolvable:$true] %s73
      %79 = dma.hbm_to_vmem [thread:$0]  %s5, 2048, %s74, [#allocation9], 128, 128, 8
    $region25: #{tpu_custom_call.1} parent=1 // pred_fallthru
      _
    // Predicated region
    $region26: #{tpu_custom_call.1} parent=1 // pred_check
      _
    $region27: #{tpu_custom_call.1} parent=1 // pred_check_branch
      %81 = sbr.rel (0) target = $region29
    $region28: #{tpu_custom_call.1} parent=1 // pred_region
      _
    $region29: #{tpu_custom_call.1} parent=1 // pred_fallthru
      _
    // Predicated region
    $region30: #{tpu_custom_call.1} parent=1 // pred_check
      _
    $region31: #{tpu_custom_call.1} parent=1 // pred_check_branch
      %83 = sbr.rel (0) target = $region33
    $region32: #{tpu_custom_call.1} parent=1 // pred_region
      %s85 = ssub.s32 2048, 2048
      %86 = vsyncadd [#allocation12], %s85
      %s87 = sshll.u32 [#allocation11], 4
      %s88 = int_to_ptr.vmem [resolvable:$true] %s87
      %93 = dma.hbm_to_vmem [thread:$0]  %s7, 2048, %s88, [#allocation12], 128, 128, 8
    $region33: #{tpu_custom_call.1} parent=1 // pred_fallthru
      _
    // Predicated region
    $region34: #{tpu_custom_call.1} parent=1 // pred_check
      _
    $region35: #{tpu_custom_call.1} parent=1 // pred_check_branch
      %95 = sbr.rel (0) target = $region37
    $region36: #{tpu_custom_call.1} parent=1 // pred_region
      _
    $region37: #{tpu_custom_call.1} parent=1 // pred_fallthru
      _
    // Predicated region
    $region38: #{tpu_custom_call.1} parent=1 // pred_check
      _
    $region39: #{tpu_custom_call.1} parent=1 // pred_check_branch
      %97 = sbr.rel (0) target = $region41
    $region40: #{tpu_custom_call.1} parent=1 // pred_region
      %98 = dma.done [#allocation3], 512
    $region41: #{tpu_custom_call.1} parent=1 // pred_fallthru
      _
    // Predicated region
    $region42: #{tpu_custom_call.1} parent=1 // pred_check
      _
    $region43: #{tpu_custom_call.1} parent=1 // pred_check_branch
      %100 = sbr.rel (0) target = $region45
    $region44: #{tpu_custom_call.1} parent=1 // pred_region
      %101 = dma.done [#allocation6], 256
    $region45: #{tpu_custom_call.1} parent=1 // pred_fallthru
      _
    // Predicated region
    $region46: #{tpu_custom_call.1} parent=1 // pred_check
      _
    $region47: #{tpu_custom_call.1} parent=1 // pred_check_branch
      %103 = sbr.rel (0) target = $region49
    $region48: #{tpu_custom_call.1} parent=1 // pred_region
      %104 = dma.done [#allocation6], 16384
    $region49: #{tpu_custom_call.1} parent=1 // pred_fallthru
      _
    // Predicated region
    $region50: #{tpu_custom_call.1} parent=1 // pred_check
      _
    $region51: #{tpu_custom_call.1} parent=1 // pred_check_branch
      %106 = sbr.rel (0) target = $region53
    $region52: #{tpu_custom_call.1} parent=1 // pred_region
      %107 = dma.done [#allocation9], 4096
    $region53: #{tpu_custom_call.1} parent=1 // pred_fallthru
      _
    // Predicated region
    $region54: #{tpu_custom_call.1} parent=1 // pred_check
      _
    $region55: #{tpu_custom_call.1} parent=1 // pred_check_branch
      %109 = sbr.rel (0) target = $region57
    $region56: #{tpu_custom_call.1} parent=1 // pred_region
      %110 = dma.done [#allocation9], 2048
    $region57: #{tpu_custom_call.1} parent=1 // pred_fallthru
      _
    // Predicated region
    $region58: #{tpu_custom_call.1} parent=1 // pred_check
      _
    $region59: #{tpu_custom_call.1} parent=1 // pred_check_branch
      %112 = sbr.rel (0) target = $region61
    $region60: #{tpu_custom_call.1} parent=1 // pred_region
      %113 = dma.done [#allocation12], 2048
    $region61: #{tpu_custom_call.1} parent=1 // pred_fallthru
      _
    %v114 = vld [vmem:[#allocation2] sm:$0xff]
    %v115 = vld [vmem:[#allocation2 + $0x8] sm:$0xff]
    %v116 = vld [vmem:[#allocation2 + $0x10] sm:$0xff]
    %v117 = vld [vmem:[#allocation2 + $0x18] sm:$0xff]
    %v118 = vld [vmem:[#allocation7] sm:$0xff]
    %v119 = vld [vmem:[#allocation7 + $0x8] sm:$0xff]
    %v120 = vld [vmem:[#allocation7 + $0x10] sm:$0xff]
    %v121 = vld [vmem:[#allocation7 + $0x18] sm:$0xff]
    %v122 = vld [vmem:[#allocation7 + $0x20] sm:$0xff]
    %v123 = vld [vmem:[#allocation7 + $0x28] sm:$0xff]
    %v124 = vld [vmem:[#allocation7 + $0x30] sm:$0xff]
    %v125 = vld [vmem:[#allocation7 + $0x38] sm:$0xff]
    %v126 = vld [vmem:[#allocation7 + $0x40] sm:$0xff]
    %v127 = vld [vmem:[#allocation7 + $0x48] sm:$0xff]
    %v128 = vld [vmem:[#allocation7 + $0x50] sm:$0xff]
    %v129 = vld [vmem:[#allocation7 + $0x58] sm:$0xff]
    %v130 = vld [vmem:[#allocation7 + $0x60] sm:$0xff]
    %v131 = vld [vmem:[#allocation7 + $0x68] sm:$0xff]
    %v132 = vld [vmem:[#allocation7 + $0x70] sm:$0xff]
    %v133 = vld [vmem:[#allocation7 + $0x78] sm:$0xff]
    %v134 = vld [vmem:[#allocation7 + $0x80] sm:$0xff]
    %v135 = vld [vmem:[#allocation7 + $0x88] sm:$0xff]
    %v136 = vld [vmem:[#allocation7 + $0x90] sm:$0xff]
    %v137 = vld [vmem:[#allocation7 + $0x98] sm:$0xff]
    %v138 = vld [vmem:[#allocation7 + $0xa0] sm:$0xff]
    %v139 = vld [vmem:[#allocation7 + $0xa8] sm:$0xff]
    %v140 = vld [vmem:[#allocation7 + $0xb0] sm:$0xff]
    %v141 = vld [vmem:[#allocation7 + $0xb8] sm:$0xff]
    %v142 = vld [vmem:[#allocation7 + $0xc0] sm:$0xff]
    %v143 = vld [vmem:[#allocation7 + $0xc8] sm:$0xff]
    %v144 = vld [vmem:[#allocation7 + $0xd0] sm:$0xff]
    %v145 = vld [vmem:[#allocation7 + $0xd8] sm:$0xff]
    %v146 = vld [vmem:[#allocation7 + $0xe0] sm:$0xff]
    %v147 = vld [vmem:[#allocation7 + $0xe8] sm:$0xff]
    %v148 = vld [vmem:[#allocation7 + $0xf0] sm:$0xff]
    %v149 = vld [vmem:[#allocation7 + $0xf8] sm:$0xff]
    %v150 = vld [vmem:[#allocation7 + $0x100] sm:$0xff]
    %v151 = vld [vmem:[#allocation7 + $0x108] sm:$0xff]
    %v152 = vld [vmem:[#allocation7 + $0x110] sm:$0xff]
    %v153 = vld [vmem:[#allocation7 + $0x118] sm:$0xff]
    %v154 = vld [vmem:[#allocation7 + $0x120] sm:$0xff]
    %v155 = vld [vmem:[#allocation7 + $0x128] sm:$0xff]
    %v156 = vld [vmem:[#allocation7 + $0x130] sm:$0xff]
    %v157 = vld [vmem:[#allocation7 + $0x138] sm:$0xff]
    %v158 = vld [vmem:[#allocation7 + $0x140] sm:$0xff]
    %v159 = vld [vmem:[#allocation7 + $0x148] sm:$0xff]
    %v160 = vld [vmem:[#allocation7 + $0x150] sm:$0xff]
    %v161 = vld [vmem:[#allocation7 + $0x158] sm:$0xff]
    %v162 = vld [vmem:[#allocation7 + $0x160] sm:$0xff]
    %v163 = vld [vmem:[#allocation7 + $0x168] sm:$0xff]
    %v164 = vld [vmem:[#allocation7 + $0x170] sm:$0xff]
    %v165 = vld [vmem:[#allocation7 + $0x178] sm:$0xff]
    %v166 = vld [vmem:[#allocation7 + $0x180] sm:$0xff]
    %v167 = vld [vmem:[#allocation7 + $0x188] sm:$0xff]
    %v168 = vld [vmem:[#allocation7 + $0x190] sm:$0xff]
    %v169 = vld [vmem:[#allocation7 + $0x198] sm:$0xff]
    %v170 = vld [vmem:[#allocation7 + $0x1a0] sm:$0xff]
    %v171 = vld [vmem:[#allocation7 + $0x1a8] sm:$0xff]
    %v172 = vld [vmem:[#allocation7 + $0x1b0] sm:$0xff]
    %v173 = vld [vmem:[#allocation7 + $0x1b8] sm:$0xff]
    %v174 = vld [vmem:[#allocation7 + $0x1c0] sm:$0xff]
    %v175 = vld [vmem:[#allocation7 + $0x1c8] sm:$0xff]
    %v176 = vld [vmem:[#allocation7 + $0x1d0] sm:$0xff]
    %v177 = vld [vmem:[#allocation7 + $0x1d8] sm:$0xff]
    %v178 = vld [vmem:[#allocation7 + $0x1e0] sm:$0xff]
    %v179 = vld [vmem:[#allocation7 + $0x1e8] sm:$0xff]
    %v180 = vld [vmem:[#allocation7 + $0x1f0] sm:$0xff]
    %v181 = vld [vmem:[#allocation7 + $0x1f8] sm:$0xff]
    %v182 = vld [vmem:[#allocation7 + $0x200] sm:$0xff]
    %v183 = vld [vmem:[#allocation7 + $0x208] sm:$0xff]
    %v184 = vld [vmem:[#allocation7 + $0x210] sm:$0xff]
    %v185 = vld [vmem:[#allocation7 + $0x218] sm:$0xff]
    %v186 = vld [vmem:[#allocation7 + $0x220] sm:$0xff]
    %v187 = vld [vmem:[#allocation7 + $0x228] sm:$0xff]
    %v188 = vld [vmem:[#allocation7 + $0x230] sm:$0xff]
    %v189 = vld [vmem:[#allocation7 + $0x238] sm:$0xff]
    %v190 = vld [vmem:[#allocation7 + $0x240] sm:$0xff]
    %v191 = vld [vmem:[#allocation7 + $0x248] sm:$0xff]
    %v192 = vld [vmem:[#allocation7 + $0x250] sm:$0xff]
    %v193 = vld [vmem:[#allocation7 + $0x258] sm:$0xff]
    %v194 = vld [vmem:[#allocation7 + $0x260] sm:$0xff]
    %v195 = vld [vmem:[#allocation7 + $0x268] sm:$0xff]
    %v196 = vld [vmem:[#allocation7 + $0x270] sm:$0xff]
    %v197 = vld [vmem:[#allocation7 + $0x278] sm:$0xff]
    %v198 = vld [vmem:[#allocation7 + $0x280] sm:$0xff]
    %v199 = vld [vmem:[#allocation7 + $0x288] sm:$0xff]
    %v200 = vld [vmem:[#allocation7 + $0x290] sm:$0xff]
    %v201 = vld [vmem:[#allocation7 + $0x298] sm:$0xff]
    %v202 = vld [vmem:[#allocation7 + $0x2a0] sm:$0xff]
    %v203 = vld [vmem:[#allocation7 + $0x2a8] sm:$0xff]
    %v204 = vld [vmem:[#allocation7 + $0x2b0] sm:$0xff]
    %v205 = vld [vmem:[#allocation7 + $0x2b8] sm:$0xff]
    %v206 = vld [vmem:[#allocation7 + $0x2c0] sm:$0xff]
    %v207 = vld [vmem:[#allocation7 + $0x2c8] sm:$0xff]
    %v208 = vld [vmem:[#allocation7 + $0x2d0] sm:$0xff]
    %v209 = vld [vmem:[#allocation7 + $0x2d8] sm:$0xff]
    %v210 = vld [vmem:[#allocation7 + $0x2e0] sm:$0xff]
    %v211 = vld [vmem:[#allocation7 + $0x2e8] sm:$0xff]
    %v212 = vld [vmem:[#allocation7 + $0x2f0] sm:$0xff]
    %v213 = vld [vmem:[#allocation7 + $0x2f8] sm:$0xff]
    %v214 = vld [vmem:[#allocation7 + $0x300] sm:$0xff]
    %v215 = vld [vmem:[#allocation7 + $0x308] sm:$0xff]
    %v216 = vld [vmem:[#allocation7 + $0x310] sm:$0xff]
    %v217 = vld [vmem:[#allocation7 + $0x318] sm:$0xff]
    %v218 = vld [vmem:[#allocation7 + $0x320] sm:$0xff]
    %v219 = vld [vmem:[#allocation7 + $0x328] sm:$0xff]
    %v220 = vld [vmem:[#allocation7 + $0x330] sm:$0xff]
    %v221 = vld [vmem:[#allocation7 + $0x338] sm:$0xff]
    %v222 = vld [vmem:[#allocation7 + $0x340] sm:$0xff]
    %v223 = vld [vmem:[#allocation7 + $0x348] sm:$0xff]
    %v224 = vld [vmem:[#allocation7 + $0x350] sm:$0xff]
    %v225 = vld [vmem:[#allocation7 + $0x358] sm:$0xff]
    %v226 = vld [vmem:[#allocation7 + $0x360] sm:$0xff]
    %v227 = vld [vmem:[#allocation7 + $0x368] sm:$0xff]
    %v228 = vld [vmem:[#allocation7 + $0x370] sm:$0xff]
    %v229 = vld [vmem:[#allocation7 + $0x378] sm:$0xff]
    %v230 = vld [vmem:[#allocation7 + $0x380] sm:$0xff]
    %v231 = vld [vmem:[#allocation7 + $0x388] sm:$0xff]
    %v232 = vld [vmem:[#allocation7 + $0x390] sm:$0xff]
    %v233 = vld [vmem:[#allocation7 + $0x398] sm:$0xff]
    %v234 = vld [vmem:[#allocation7 + $0x3a0] sm:$0xff]
    %v235 = vld [vmem:[#allocation7 + $0x3a8] sm:$0xff]
    %v236 = vld [vmem:[#allocation7 + $0x3b0] sm:$0xff]
    %v237 = vld [vmem:[#allocation7 + $0x3b8] sm:$0xff]
    %v238 = vld [vmem:[#allocation7 + $0x3c0] sm:$0xff]
    %v239 = vld [vmem:[#allocation7 + $0x3c8] sm:$0xff]
    %v240 = vld [vmem:[#allocation7 + $0x3d0] sm:$0xff]
    %v241 = vld [vmem:[#allocation7 + $0x3d8] sm:$0xff]
    %v242 = vld [vmem:[#allocation7 + $0x3e0] sm:$0xff]
    %v243 = vld [vmem:[#allocation7 + $0x3e8] sm:$0xff]
    %v244 = vld [vmem:[#allocation7 + $0x3f0] sm:$0xff]
    %v245 = vld [vmem:[#allocation7 + $0x3f8] sm:$0xff]
    %v246 = vld [vmem:[%s4] sm:$0x1]
    %v248 = vlaneseq
    %v249 = vshrl.u32 %v248, 7
    %v250 = vsub.s32 0, %v249
    %v251 = vrot.slane %v246, %v250
    %v257 = vcombine.high %v114, %v114
    %v258 = vcombine.high %v115, %v115
    %v259 = vcombine.high %v116, %v116
    %v260 = vcombine.high %v117, %v117
    %265 = vmatprep.subr.mxu0 0.0
    %266 = vmatpush1.msra.mxu0 %v133
    %267 = vmatprep.subr.mxu0 0.0
    %268 = vmatpush1.msra.mxu0 %v132
    %269 = vmatprep.subr.mxu0 0.0
    %270 = vmatpush1.msra.mxu0 %v131
    %271 = vmatprep.subr.mxu0 0.0
    %272 = vmatpush1.msra.mxu0 %v130
    %273 = vmatprep.subr.mxu0 0.0
    %274 = vmatpush1.msra.mxu0 %v129
    %275 = vmatprep.subr.mxu0 0.0
    %276 = vmatpush1.msra.mxu0 %v128
    %277 = vmatprep.subr.mxu0 0.0
    %278 = vmatpush1.msra.mxu0 %v127
    %279 = vmatprep.subr.mxu0 0.0
    %280 = vmatpush1.msra.mxu0 %v126
    %281 = vmatprep.subr.mxu0 0.0
    %282 = vmatpush1.msra.mxu0 %v125
    %283 = vmatprep.subr.mxu0 0.0
    %284 = vmatpush1.msra.mxu0 %v124
    %285 = vmatprep.subr.mxu0 0.0
    %286 = vmatpush1.msra.mxu0 %v123
    %287 = vmatprep.subr.mxu0 0.0
    %288 = vmatpush1.msra.mxu0 %v122
    %289 = vmatprep.subr.mxu0 0.0
    %290 = vmatpush1.msra.mxu0 %v121
    %291 = vmatprep.subr.mxu0 0.0
    %292 = vmatpush1.msra.mxu0 %v120
    %293 = vmatprep.subr.mxu0 0.0
    %294 = vmatpush1.msra.mxu0 %v119
    %295 = vmatprep.subr.mxu0 0.0
    %296 = vmatpush1.msra.mxu0 %v118
    %297 = vmatprep.subr.mxu0 0.0
    %298 = vmatpush2.msra.mxu0 %v149
    %299 = vmatprep.subr.mxu0 0.0
    %300 = vmatpush2.msra.mxu0 %v148
    %301 = vmatprep.subr.mxu0 0.0
    %302 = vmatpush2.msra.mxu0 %v147
    %303 = vmatprep.subr.mxu0 0.0
    %304 = vmatpush2.msra.mxu0 %v146
    %305 = vmatprep.subr.mxu0 0.0
    %306 = vmatpush2.msra.mxu0 %v145
    %307 = vmatprep.subr.mxu0 0.0
    %308 = vmatpush2.msra.mxu0 %v144
    %309 = vmatprep.subr.mxu0 0.0
    %310 = vmatpush2.msra.mxu0 %v143
    %311 = vmatprep.subr.mxu0 0.0
    %312 = vmatpush2.msra.mxu0 %v142
    %313 = vmatprep.subr.mxu0 0.0
    %314 = vmatpush2.msra.mxu0 %v141
    %315 = vmatprep.subr.mxu0 0.0
    %316 = vmatpush2.msra.mxu0 %v140
    %317 = vmatprep.subr.mxu0 0.0
    %318 = vmatpush2.msra.mxu0 %v139
    %319 = vmatprep.subr.mxu0 0.0
    %320 = vmatpush2.msra.mxu0 %v138
    %321 = vmatprep.subr.mxu0 0.0
    %322 = vmatpush2.msra.mxu0 %v137
    %323 = vmatprep.subr.mxu0 0.0
    %324 = vmatpush2.msra.mxu0 %v136
    %325 = vmatprep.subr.mxu0 0.0
    %326 = vmatpush2.msra.mxu0 %v135
    %327 = vmatprep.subr.mxu0 0.0
    %328 = vmatpush2.msra.mxu0 %v134
    %329 = vmatprep.mubr.f32.mxu0 %v257
    %330 = vmatmul.mubr.f32.gmra.mxu0 %v114
    %v331 = vpop.f32.mrf.mxu0
    %v332 = vadd.f32 %v251, %v331
    %v333 = vpop.f32.mrf.mxu0
    %334 = vdwg.mxu0
    %335 = vmatprep.subr.mxu0 0.0
    %336 = vmatpush1.msra.mxu0 %v165
    %337 = vmatprep.subr.mxu0 0.0
    %338 = vmatpush1.msra.mxu0 %v164
    %339 = vmatprep.subr.mxu0 0.0
    %340 = vmatpush1.msra.mxu0 %v163
    %341 = vmatprep.subr.mxu0 0.0
    %342 = vmatpush1.msra.mxu0 %v162
    %343 = vmatprep.subr.mxu0 0.0
    %344 = vmatpush1.msra.mxu0 %v161
    %345 = vmatprep.subr.mxu0 0.0
    %346 = vmatpush1.msra.mxu0 %v160
    %347 = vmatprep.subr.mxu0 0.0
    %348 = vmatpush1.msra.mxu0 %v159
    %349 = vmatprep.subr.mxu0 0.0
    %350 = vmatpush1.msra.mxu0 %v158
    %351 = vmatprep.subr.mxu0 0.0
    %352 = vmatpush1.msra.mxu0 %v157
    %353 = vmatprep.subr.mxu0 0.0
    %354 = vmatpush1.msra.mxu0 %v156
    %355 = vmatprep.subr.mxu0 0.0
    %356 = vmatpush1.msra.mxu0 %v155
    %357 = vmatprep.subr.mxu0 0.0
    %358 = vmatpush1.msra.mxu0 %v154
    %359 = vmatprep.subr.mxu0 0.0
    %360 = vmatpush1.msra.mxu0 %v153
    %361 = vmatprep.subr.mxu0 0.0
    %362 = vmatpush1.msra.mxu0 %v152
    %363 = vmatprep.subr.mxu0 0.0
    %364 = vmatpush1.msra.mxu0 %v151
    %365 = vmatprep.subr.mxu0 0.0
    %366 = vmatpush1.msra.mxu0 %v150
    %367 = vmatprep.subr.mxu0 0.0
    %368 = vmatpush2.msra.mxu0 %v181
    %369 = vmatprep.subr.mxu0 0.0
    %370 = vmatpush2.msra.mxu0 %v180
    %371 = vmatprep.subr.mxu0 0.0
    %372 = vmatpush2.msra.mxu0 %v179
    %373 = vmatprep.subr.mxu0 0.0
    %374 = vmatpush2.msra.mxu0 %v178
    %375 = vmatprep.subr.mxu0 0.0
    %376 = vmatpush2.msra.mxu0 %v177
    %377 = vmatprep.subr.mxu0 0.0
    %378 = vmatpush2.msra.mxu0 %v176
    %379 = vmatprep.subr.mxu0 0.0
    %380 = vmatpush2.msra.mxu0 %v175
    %381 = vmatprep.subr.mxu0 0.0
    %382 = vmatpush2.msra.mxu0 %v174
    %383 = vmatprep.subr.mxu0 0.0
    %384 = vmatpush2.msra.mxu0 %v173
    %385 = vmatprep.subr.mxu0 0.0
    %386 = vmatpush2.msra.mxu0 %v172
    %387 = vmatprep.subr.mxu0 0.0
    %388 = vmatpush2.msra.mxu0 %v171
    %389 = vmatprep.subr.mxu0 0.0
    %390 = vmatpush2.msra.mxu0 %v170
    %391 = vmatprep.subr.mxu0 0.0
    %392 = vmatpush2.msra.mxu0 %v169
    %393 = vmatprep.subr.mxu0 0.0
    %394 = vmatpush2.msra.mxu0 %v168
    %395 = vmatprep.subr.mxu0 0.0
    %396 = vmatpush2.msra.mxu0 %v167
    %397 = vmatprep.subr.mxu0 0.0
    %398 = vmatpush2.msra.mxu0 %v166
    %399 = vmatprep.mubr.f32.mxu0 %v258
    %400 = vmatmul.mubr.f32.gmra.mxu0 %v115
    %v401 = vpop.f32.mrf.mxu0
    %v402 = vadd.f32 %v332, %v401
    %v403 = vpop.f32.mrf.mxu0
    %404 = vdwg.mxu0
    %405 = vmatprep.subr.mxu0 0.0
    %406 = vmatpush1.msra.mxu0 %v197
    %407 = vmatprep.subr.mxu0 0.0
    %408 = vmatpush1.msra.mxu0 %v196
    %409 = vmatprep.subr.mxu0 0.0
    %410 = vmatpush1.msra.mxu0 %v195
    %411 = vmatprep.subr.mxu0 0.0
    %412 = vmatpush1.msra.mxu0 %v194
    %413 = vmatprep.subr.mxu0 0.0
    %414 = vmatpush1.msra.mxu0 %v193
    %415 = vmatprep.subr.mxu0 0.0
    %416 = vmatpush1.msra.mxu0 %v192
    %417 = vmatprep.subr.mxu0 0.0
    %418 = vmatpush1.msra.mxu0 %v191
    %419 = vmatprep.subr.mxu0 0.0
    %420 = vmatpush1.msra.mxu0 %v190
    %421 = vmatprep.subr.mxu0 0.0
    %422 = vmatpush1.msra.mxu0 %v189
    %423 = vmatprep.subr.mxu0 0.0
    %424 = vmatpush1.msra.mxu0 %v188
    %425 = vmatprep.subr.mxu0 0.0
    %426 = vmatpush1.msra.mxu0 %v187
    %427 = vmatprep.subr.mxu0 0.0
    %428 = vmatpush1.msra.mxu0 %v186
    %429 = vmatprep.subr.mxu0 0.0
    %430 = vmatpush1.msra.mxu0 %v185
    %431 = vmatprep.subr.mxu0 0.0
    %432 = vmatpush1.msra.mxu0 %v184
    %433 = vmatprep.subr.mxu0 0.0
    %434 = vmatpush1.msra.mxu0 %v183
    %435 = vmatprep.subr.mxu0 0.0
    %436 = vmatpush1.msra.mxu0 %v182
    %437 = vmatprep.subr.mxu0 0.0
    %438 = vmatpush2.msra.mxu0 %v213
    %439 = vmatprep.subr.mxu0 0.0
    %440 = vmatpush2.msra.mxu0 %v212
    %441 = vmatprep.subr.mxu0 0.0
    %442 = vmatpush2.msra.mxu0 %v211
    %443 = vmatprep.subr.mxu0 0.0
    %444 = vmatpush2.msra.mxu0 %v210
    %445 = vmatprep.subr.mxu0 0.0
    %446 = vmatpush2.msra.mxu0 %v209
    %447 = vmatprep.subr.mxu0 0.0
    %448 = vmatpush2.msra.mxu0 %v208
    %449 = vmatprep.subr.mxu0 0.0
    %450 = vmatpush2.msra.mxu0 %v207
    %451 = vmatprep.subr.mxu0 0.0
    %452 = vmatpush2.msra.mxu0 %v206
    %453 = vmatprep.subr.mxu0 0.0
    %454 = vmatpush2.msra.mxu0 %v205
    %455 = vmatprep.subr.mxu0 0.0
    %456 = vmatpush2.msra.mxu0 %v204
    %457 = vmatprep.subr.mxu0 0.0
    %458 = vmatpush2.msra.mxu0 %v203
    %459 = vmatprep.subr.mxu0 0.0
    %460 = vmatpush2.msra.mxu0 %v202
    %461 = vmatprep.subr.mxu0 0.0
    %462 = vmatpush2.msra.mxu0 %v201
    %463 = vmatprep.subr.mxu0 0.0
    %464 = vmatpush2.msra.mxu0 %v200
    %465 = vmatprep.subr.mxu0 0.0
    %466 = vmatpush2.msra.mxu0 %v199
    %467 = vmatprep.subr.mxu0 0.0
    %468 = vmatpush2.msra.mxu0 %v198
    %469 = vmatprep.mubr.f32.mxu0 %v259
    %470 = vmatmul.mubr.f32.gmra.mxu0 %v116
    %v471 = vpop.f32.mrf.mxu0
    %v472 = vadd.f32 %v402, %v471
    %v473 = vpop.f32.mrf.mxu0
    %474 = vdwg.mxu0
    %475 = vmatprep.subr.mxu0 0.0
    %476 = vmatpush1.msra.mxu0 %v229
    %477 = vmatprep.subr.mxu0 0.0
    %478 = vmatpush1.msra.mxu0 %v228
    %479 = vmatprep.subr.mxu0 0.0
    %480 = vmatpush1.msra.mxu0 %v227
    %481 = vmatprep.subr.mxu0 0.0
    %482 = vmatpush1.msra.mxu0 %v226
    %483 = vmatprep.subr.mxu0 0.0
    %484 = vmatpush1.msra.mxu0 %v225
    %485 = vmatprep.subr.mxu0 0.0
    %486 = vmatpush1.msra.mxu0 %v224
    %487 = vmatprep.subr.mxu0 0.0
    %488 = vmatpush1.msra.mxu0 %v223
    %489 = vmatprep.subr.mxu0 0.0
    %490 = vmatpush1.msra.mxu0 %v222
    %491 = vmatprep.subr.mxu0 0.0
    %492 = vmatpush1.msra.mxu0 %v221
    %493 = vmatprep.subr.mxu0 0.0
    %494 = vmatpush1.msra.mxu0 %v220
    %495 = vmatprep.subr.mxu0 0.0
    %496 = vmatpush1.msra.mxu0 %v219
    %497 = vmatprep.subr.mxu0 0.0
    %498 = vmatpush1.msra.mxu0 %v218
    %499 = vmatprep.subr.mxu0 0.0
    %500 = vmatpush1.msra.mxu0 %v217
    %501 = vmatprep.subr.mxu0 0.0
    %502 = vmatpush1.msra.mxu0 %v216
    %503 = vmatprep.subr.mxu0 0.0
    %504 = vmatpush1.msra.mxu0 %v215
    %505 = vmatprep.subr.mxu0 0.0
    %506 = vmatpush1.msra.mxu0 %v214
    %507 = vmatprep.subr.mxu0 0.0
    %508 = vmatpush2.msra.mxu0 %v245
    %509 = vmatprep.subr.mxu0 0.0
    %510 = vmatpush2.msra.mxu0 %v244
    %511 = vmatprep.subr.mxu0 0.0
    %512 = vmatpush2.msra.mxu0 %v243
    %513 = vmatprep.subr.mxu0 0.0
    %514 = vmatpush2.msra.mxu0 %v242
    %515 = vmatprep.subr.mxu0 0.0
    %516 = vmatpush2.msra.mxu0 %v241
    %517 = vmatprep.subr.mxu0 0.0
    %518 = vmatpush2.msra.mxu0 %v240
    %519 = vmatprep.subr.mxu0 0.0
    %520 = vmatpush2.msra.mxu0 %v239
    %521 = vmatprep.subr.mxu0 0.0
    %522 = vmatpush2.msra.mxu0 %v238
    %523 = vmatprep.subr.mxu0 0.0
    %524 = vmatpush2.msra.mxu0 %v237
    %525 = vmatprep.subr.mxu0 0.0
    %526 = vmatpush2.msra.mxu0 %v236
    %527 = vmatprep.subr.mxu0 0.0
    %528 = vmatpush2.msra.mxu0 %v235
    %529 = vmatprep.subr.mxu0 0.0
    %530 = vmatpush2.msra.mxu0 %v234
    %531 = vmatprep.subr.mxu0 0.0
    %532 = vmatpush2.msra.mxu0 %v233
    %533 = vmatprep.subr.mxu0 0.0
    %534 = vmatpush2.msra.mxu0 %v232
    %535 = vmatprep.subr.mxu0 0.0
    %536 = vmatpush2.msra.mxu0 %v231
    %537 = vmatprep.subr.mxu0 0.0
    %538 = vmatpush2.msra.mxu0 %v230
    %539 = vmatprep.mubr.f32.mxu0 %v260
    %540 = vmatmul.mubr.f32.gmra.mxu0 %v117
    %v541 = vpop.f32.mrf.mxu0
    %v542 = vadd.f32 %v472, %v541
    %v543 = vpop.f32.mrf.mxu0
    %544 = vdwg.mxu0
    %v545 = vld [vmem:[#allocation10] sm:$0xff]
    %v546 = vld [vmem:[#allocation10 + $0x8] sm:$0xff]
    %v547 = vld [vmem:[#allocation10 + $0x10] sm:$0xff]
    %v548 = vld [vmem:[#allocation10 + $0x18] sm:$0xff]
    %v549 = vld [vmem:[#allocation10 + $0x20] sm:$0xff]
    %v550 = vld [vmem:[#allocation10 + $0x28] sm:$0xff]
    %v551 = vld [vmem:[#allocation10 + $0x30] sm:$0xff]
    %v552 = vld [vmem:[#allocation10 + $0x38] sm:$0xff]
    %v553 = vld [vmem:[#allocation10 + $0x40] sm:$0xff]
    %v554 = vld [vmem:[#allocation10 + $0x48] sm:$0xff]
    %v555 = vld [vmem:[#allocation10 + $0x50] sm:$0xff]
    %v556 = vld [vmem:[#allocation10 + $0x58] sm:$0xff]
    %v557 = vld [vmem:[#allocation10 + $0x60] sm:$0xff]
    %v558 = vld [vmem:[#allocation10 + $0x68] sm:$0xff]
    %v559 = vld [vmem:[#allocation10 + $0x70] sm:$0xff]
    %v560 = vld [vmem:[#allocation10 + $0x78] sm:$0xff]
    %v561 = vld [vmem:[%s6] sm:$0x1]
    %v563 = vlaneseq
    %v564 = vshrl.u32 %v563, 7
    %v565 = vsub.s32 0, %v564
    %v566 = vrot.slane %v561, %v565
    %568 = vmatprep.subr.mxu0 0.0
    %569 = vmatpush1.msra.mxu0 %v560
    %570 = vmatprep.subr.mxu0 0.0
    %571 = vmatpush1.msra.mxu0 %v559
    %572 = vmatprep.subr.mxu0 0.0
    %573 = vmatpush1.msra.mxu0 %v558
    %574 = vmatprep.subr.mxu0 0.0
    %575 = vmatpush1.msra.mxu0 %v557
    %576 = vmatprep.subr.mxu0 0.0
    %577 = vmatpush1.msra.mxu0 %v556
    %578 = vmatprep.subr.mxu0 0.0
    %579 = vmatpush1.msra.mxu0 %v555
    %580 = vmatprep.subr.mxu0 0.0
    %581 = vmatpush1.msra.mxu0 %v554
    %582 = vmatprep.subr.mxu0 0.0
    %583 = vmatpush1.msra.mxu0 %v553
    %584 = vmatprep.subr.mxu0 0.0
    %585 = vmatpush1.msra.mxu0 %v552
    %586 = vmatprep.subr.mxu0 0.0
    %587 = vmatpush1.msra.mxu0 %v551
    %588 = vmatprep.subr.mxu0 0.0
    %589 = vmatpush1.msra.mxu0 %v550
    %590 = vmatprep.subr.mxu0 0.0
    %591 = vmatpush1.msra.mxu0 %v549
    %592 = vmatprep.subr.mxu0 0.0
    %593 = vmatpush1.msra.mxu0 %v548
    %594 = vmatprep.subr.mxu0 0.0
    %595 = vmatpush1.msra.mxu0 %v547
    %596 = vmatprep.subr.mxu0 0.0
    %597 = vmatpush1.msra.mxu0 %v546
    %598 = vmatprep.subr.mxu0 0.0
    %599 = vmatpush1.msra.mxu0 %v545
    %600 = vmatprep.subr.mxu0 0.0
    %601 = vmatpush2.msra.mxu0 0.0
    %602 = vmatprep.subr.mxu0 0.0
    %603 = vmatpush2.msra.mxu0 0.0
    %604 = vmatprep.subr.mxu0 0.0
    %605 = vmatpush2.msra.mxu0 0.0
    %606 = vmatprep.subr.mxu0 0.0
    %607 = vmatpush2.msra.mxu0 0.0
    %608 = vmatprep.subr.mxu0 0.0
    %609 = vmatpush2.msra.mxu0 0.0
    %610 = vmatprep.subr.mxu0 0.0
    %611 = vmatpush2.msra.mxu0 0.0
    %612 = vmatprep.subr.mxu0 0.0
    %613 = vmatpush2.msra.mxu0 0.0
    %614 = vmatprep.subr.mxu0 0.0
    %615 = vmatpush2.msra.mxu0 0.0
    %616 = vmatprep.subr.mxu0 0.0
    %617 = vmatpush2.msra.mxu0 0.0
    %618 = vmatprep.subr.mxu0 0.0
    %619 = vmatpush2.msra.mxu0 0.0
    %620 = vmatprep.subr.mxu0 0.0
    %621 = vmatpush2.msra.mxu0 0.0
    %622 = vmatprep.subr.mxu0 0.0
    %623 = vmatpush2.msra.mxu0 0.0
    %624 = vmatprep.subr.mxu0 0.0
    %625 = vmatpush2.msra.mxu0 0.0
    %626 = vmatprep.subr.mxu0 0.0
    %627 = vmatpush2.msra.mxu0 0.0
    %628 = vmatprep.subr.mxu0 0.0
    %629 = vmatpush2.msra.mxu0 0.0
    %630 = vmatprep.subr.mxu0 0.0
    %631 = vmatpush2.msra.mxu0 0.0
    %632 = vmatprep.mubr.f32.mxu0 0.0
    %633 = vmatmul.mubr.f32.gmra.mxu0 %v542
    %v634 = vpop.f32.mrf.mxu0
    %v635 = vadd.f32 %v566, %v634
    %v636 = vpop.f32.mrf.mxu0
    %637 = vdwg.mxu0
    %v638 = vmul.f32 %v635, 0.5
    %v639 = vmul.f32 %v635, 0.044715
    %v640 = vmul.f32 %v639, %v635
    %v641 = vmul.f32 %v640, %v635
    %v642 = vadd.f32 %v635, %v641
    %v643 = vmul.f32 %v642, 0.7978846
    %v644 = vtanh.pop %v643
    %v645 = vadd.f32 %v644, 1.0
    %v646 = vmul.f32 %v638, %v645
    %v647 = vld [vmem:[#allocation11] sm:$0xff]
    %v648 = vld [vmem:[#allocation11 + $0x8] sm:$0xff]
    %v649 = vld [vmem:[#allocation11 + $0x10] sm:$0xff]
    %v650 = vld [vmem:[#allocation11 + $0x18] sm:$0xff]
    %v651 = vld [vmem:[#allocation11 + $0x20] sm:$0xff]
    %v652 = vld [vmem:[#allocation11 + $0x28] sm:$0xff]
    %v653 = vld [vmem:[#allocation11 + $0x30] sm:$0xff]
    %v654 = vld [vmem:[#allocation11 + $0x38] sm:$0xff]
    %v655 = vld [vmem:[#allocation11 + $0x40] sm:$0xff]
    %v656 = vld [vmem:[#allocation11 + $0x48] sm:$0xff]
    %v657 = vld [vmem:[#allocation11 + $0x50] sm:$0xff]
    %v658 = vld [vmem:[#allocation11 + $0x58] sm:$0xff]
    %v659 = vld [vmem:[#allocation11 + $0x60] sm:$0xff]
    %v660 = vld [vmem:[#allocation11 + $0x68] sm:$0xff]
    %v661 = vld [vmem:[#allocation11 + $0x70] sm:$0xff]
    %v662 = vld [vmem:[#allocation11 + $0x78] sm:$0xff]
    %v663 = vld [vmem:[%s8] sm:$0x1]
    %v665 = vlaneseq
    %v666 = vshrl.u32 %v665, 7
    %v667 = vsub.s32 0, %v666
    %v668 = vrot.slane %v663, %v667
    %670 = vmatprep.subr.mxu0 0.0
    %671 = vmatpush1.msra.mxu0 %v662
    %672 = vmatprep.subr.mxu0 0.0
    %673 = vmatpush1.msra.mxu0 %v661
    %674 = vmatprep.subr.mxu0 0.0
    %675 = vmatpush1.msra.mxu0 %v660
    %676 = vmatprep.subr.mxu0 0.0
    %677 = vmatpush1.msra.mxu0 %v659
    %678 = vmatprep.subr.mxu0 0.0
    %679 = vmatpush1.msra.mxu0 %v658
    %680 = vmatprep.subr.mxu0 0.0
    %681 = vmatpush1.msra.mxu0 %v657
    %682 = vmatprep.subr.mxu0 0.0
    %683 = vmatpush1.msra.mxu0 %v656
    %684 = vmatprep.subr.mxu0 0.0
    %685 = vmatpush1.msra.mxu0 %v655
    %686 = vmatprep.subr.mxu0 0.0
    %687 = vmatpush1.msra.mxu0 %v654
    %688 = vmatprep.subr.mxu0 0.0
    %689 = vmatpush1.msra.mxu0 %v653
    %690 = vmatprep.subr.mxu0 0.0
    %691 = vmatpush1.msra.mxu0 %v652
    %692 = vmatprep.subr.mxu0 0.0
    %693 = vmatpush1.msra.mxu0 %v651
    %694 = vmatprep.subr.mxu0 0.0
    %695 = vmatpush1.msra.mxu0 %v650
    %696 = vmatprep.subr.mxu0 0.0
    %697 = vmatpush1.msra.mxu0 %v649
    %698 = vmatprep.subr.mxu0 0.0
    %699 = vmatpush1.msra.mxu0 %v648
    %700 = vmatprep.subr.mxu0 0.0
    %701 = vmatpush1.msra.mxu0 %v647
    %702 = vmatprep.subr.mxu0 0.0
    %703 = vmatpush2.msra.mxu0 0.0
    %704 = vmatprep.subr.mxu0 0.0
    %705 = vmatpush2.msra.mxu0 0.0
    %706 = vmatprep.subr.mxu0 0.0
    %707 = vmatpush2.msra.mxu0 0.0
    %708 = vmatprep.subr.mxu0 0.0
    %709 = vmatpush2.msra.mxu0 0.0
    %710 = vmatprep.subr.mxu0 0.0
    %711 = vmatpush2.msra.mxu0 0.0
    %712 = vmatprep.subr.mxu0 0.0
    %713 = vmatpush2.msra.mxu0 0.0
    %714 = vmatprep.subr.mxu0 0.0
    %715 = vmatpush2.msra.mxu0 0.0
    %716 = vmatprep.subr.mxu0 0.0
    %717 = vmatpush2.msra.mxu0 0.0
    %718 = vmatprep.subr.mxu0 0.0
    %719 = vmatpush2.msra.mxu0 0.0
    %720 = vmatprep.subr.mxu0 0.0
    %721 = vmatpush2.msra.mxu0 0.0
    %722 = vmatprep.subr.mxu0 0.0
    %723 = vmatpush2.msra.mxu0 0.0
    %724 = vmatprep.subr.mxu0 0.0
    %725 = vmatpush2.msra.mxu0 0.0
    %726 = vmatprep.subr.mxu0 0.0
    %727 = vmatpush2.msra.mxu0 0.0
    %728 = vmatprep.subr.mxu0 0.0
    %729 = vmatpush2.msra.mxu0 0.0
    %730 = vmatprep.subr.mxu0 0.0
    %731 = vmatpush2.msra.mxu0 0.0
    %732 = vmatprep.subr.mxu0 0.0
    %733 = vmatpush2.msra.mxu0 0.0
    %734 = vmatprep.mubr.f32.mxu0 0.0
    %735 = vmatmul.mubr.f32.gmra.mxu0 %v646
    %v736 = vpop.f32.mrf.mxu0
    %v737 = vadd.f32 %v668, %v736
    %v738 = vpop.f32.mrf.mxu0
    %739 = vdwg.mxu0
    %740 = vst [vmem:[#allocation13] sm:$0xf] %v737
    %v741 = vld [vmem:[#allocation5] sm:$0x3f]
    %v742 = vld [vmem:[#allocation5 + $0x8] sm:$0x3f]
    %v743 = vld [vmem:[#allocation8] sm:$0xff]
    %v744 = vld [vmem:[#allocation8 + $0x8] sm:$0xff]
    %v745 = vld [vmem:[#allocation8 + $0x10] sm:$0xff]
    %v746 = vld [vmem:[#allocation8 + $0x18] sm:$0xff]
    %v747 = vld [vmem:[#allocation8 + $0x20] sm:$0xff]
    %v748 = vld [vmem:[#allocation8 + $0x28] sm:$0xff]
    %v749 = vld [vmem:[#allocation8 + $0x30] sm:$0xff]
    %v750 = vld [vmem:[#allocation8 + $0x38] sm:$0xff]
    %v751 = vld [vmem:[#allocation8 + $0x40] sm:$0xff]
    %v752 = vld [vmem:[#allocation8 + $0x48] sm:$0xff]
    %v753 = vld [vmem:[#allocation8 + $0x50] sm:$0xff]
    %v754 = vld [vmem:[#allocation8 + $0x58] sm:$0xff]
    %v755 = vld [vmem:[#allocation8 + $0x60] sm:$0xff]
    %v756 = vld [vmem:[#allocation8 + $0x68] sm:$0xff]
    %v757 = vld [vmem:[#allocation8 + $0x70] sm:$0xff]
    %v758 = vld [vmem:[#allocation8 + $0x78] sm:$0xff]
    %v759 = vld [vmem:[#allocation8 + $0x80] sm:$0xff]
    %v760 = vld [vmem:[#allocation8 + $0x88] sm:$0xff]
    %v761 = vld [vmem:[#allocation8 + $0x90] sm:$0xff]
    %v762 = vld [vmem:[#allocation8 + $0x98] sm:$0xff]
    %v763 = vld [vmem:[#allocation8 + $0xa0] sm:$0xff]
    %v764 = vld [vmem:[#allocation8 + $0xa8] sm:$0xff]
    %v765 = vld [vmem:[#allocation8 + $0xb0] sm:$0xff]
    %v766 = vld [vmem:[#allocation8 + $0xb8] sm:$0xff]
    %v767 = vld [vmem:[#allocation8 + $0xc0] sm:$0xff]
    %v768 = vld [vmem:[#allocation8 + $0xc8] sm:$0xff]
    %v769 = vld [vmem:[#allocation8 + $0xd0] sm:$0xff]
    %v770 = vld [vmem:[#allocation8 + $0xd8] sm:$0xff]
    %v771 = vld [vmem:[#allocation8 + $0xe0] sm:$0xff]
    %v772 = vld [vmem:[#allocation8 + $0xe8] sm:$0xff]
    %v773 = vld [vmem:[#allocation8 + $0xf0] sm:$0xff]
    %v774 = vld [vmem:[#allocation8 + $0xf8] sm:$0xff]
    %v775 = vld [vmem:[%s4] sm:$0x1]
    %v777 = vlaneseq
    %v778 = vshrl.u32 %v777, 7
    %v779 = vsub.s32 0, %v778
    %v780 = vrot.slane %v775, %v779
    %782 = vmatprep.subr.mxu0 0.0
    %783 = vmatpush1.msra.mxu0 %v758
    %784 = vmatprep.subr.mxu0 0.0
    %785 = vmatpush1.msra.mxu0 %v757
    %786 = vmatprep.subr.mxu0 0.0
    %787 = vmatpush1.msra.mxu0 %v756
    %788 = vmatprep.subr.mxu0 0.0
    %789 = vmatpush1.msra.mxu0 %v755
    %790 = vmatprep.subr.mxu0 0.0
    %791 = vmatpush1.msra.mxu0 %v754
    %792 = vmatprep.subr.mxu0 0.0
    %793 = vmatpush1.msra.mxu0 %v753
    %794 = vmatprep.subr.mxu0 0.0
    %795 = vmatpush1.msra.mxu0 %v752
    %796 = vmatprep.subr.mxu0 0.0
    %797 = vmatpush1.msra.mxu0 %v751
    %798 = vmatprep.subr.mxu0 0.0
    %799 = vmatpush1.msra.mxu0 %v750
    %800 = vmatprep.subr.mxu0 0.0
    %801 = vmatpush1.msra.mxu0 %v749
    %802 = vmatprep.subr.mxu0 0.0
    %803 = vmatpush1.msra.mxu0 %v748
    %804 = vmatprep.subr.mxu0 0.0
    %805 = vmatpush1.msra.mxu0 %v747
    %806 = vmatprep.subr.mxu0 0.0
    %807 = vmatpush1.msra.mxu0 %v746
    %808 = vmatprep.subr.mxu0 0.0
    %809 = vmatpush1.msra.mxu0 %v745
    %810 = vmatprep.subr.mxu0 0.0
    %811 = vmatpush1.msra.mxu0 %v744
    %812 = vmatprep.subr.mxu0 0.0
    %813 = vmatpush1.msra.mxu0 %v743
    %814 = vmatprep.subr.mxu0 0.0
    %815 = vmatpush2.msra.mxu0 %v774
    %816 = vmatprep.subr.mxu0 0.0
    %817 = vmatpush2.msra.mxu0 %v773
    %818 = vmatprep.subr.mxu0 0.0
    %819 = vmatpush2.msra.mxu0 %v772
    %820 = vmatprep.subr.mxu0 0.0
    %821 = vmatpush2.msra.mxu0 %v771
    %822 = vmatprep.subr.mxu0 0.0
    %823 = vmatpush2.msra.mxu0 %v770
    %824 = vmatprep.subr.mxu0 0.0
    %825 = vmatpush2.msra.mxu0 %v769
    %826 = vmatprep.subr.mxu0 0.0
    %827 = vmatpush2.msra.mxu0 %v768
    %828 = vmatprep.subr.mxu0 0.0
    %829 = vmatpush2.msra.mxu0 %v767
    %830 = vmatprep.subr.mxu0 0.0
    %831 = vmatpush2.msra.mxu0 %v766
    %832 = vmatprep.subr.mxu0 0.0
    %833 = vmatpush2.msra.mxu0 %v765
    %834 = vmatprep.subr.mxu0 0.0
    %835 = vmatpush2.msra.mxu0 %v764
    %836 = vmatprep.subr.mxu0 0.0
    %837 = vmatpush2.msra.mxu0 %v763
    %838 = vmatprep.subr.mxu0 0.0
    %839 = vmatpush2.msra.mxu0 %v762
    %840 = vmatprep.subr.mxu0 0.0
    %841 = vmatpush2.msra.mxu0 %v761
    %842 = vmatprep.subr.mxu0 0.0
    %843 = vmatpush2.msra.mxu0 %v760
    %844 = vmatprep.subr.mxu0 0.0
    %845 = vmatpush2.msra.mxu0 %v759
    %846 = vmatprep.mubr.f32.mxu0 %v742
    %847 = vmatmul.mubr.f32.gmra.mxu0 %v741
    %v848 = vpop.f32.mrf.mxu0
    %v849 = vadd.f32 %v780, %v848
    %v850 = vpop.f32.mrf.mxu0
    %851 = vdwg.mxu0
    %v852 = vld [vmem:[#allocation10] sm:$0xff]
    %v853 = vld [vmem:[#allocation10 + $0x8] sm:$0xff]
    %v854 = vld [vmem:[#allocation10 + $0x10] sm:$0xff]
    %v855 = vld [vmem:[#allocation10 + $0x18] sm:$0xff]
    %v856 = vld [vmem:[#allocation10 + $0x20] sm:$0xff]
    %v857 = vld [vmem:[#allocation10 + $0x28] sm:$0xff]
    %v858 = vld [vmem:[#allocation10 + $0x30] sm:$0xff]
    %v859 = vld [vmem:[#allocation10 + $0x38] sm:$0xff]
    %v860 = vld [vmem:[#allocation10 + $0x40] sm:$0xff]
    %v861 = vld [vmem:[#allocation10 + $0x48] sm:$0xff]
    %v862 = vld [vmem:[#allocation10 + $0x50] sm:$0xff]
    %v863 = vld [vmem:[#allocation10 + $0x58] sm:$0xff]
    %v864 = vld [vmem:[#allocation10 + $0x60] sm:$0xff]
    %v865 = vld [vmem:[#allocation10 + $0x68] sm:$0xff]
    %v866 = vld [vmem:[#allocation10 + $0x70] sm:$0xff]
    %v867 = vld [vmem:[#allocation10 + $0x78] sm:$0xff]
    %v868 = vld [vmem:[%s6] sm:$0x1]
    %v870 = vlaneseq
    %v871 = vshrl.u32 %v870, 7
    %v872 = vsub.s32 0, %v871
    %v873 = vrot.slane %v868, %v872
    %875 = vmatprep.subr.mxu0 0.0
    %876 = vmatpush1.msra.mxu0 %v867
    %877 = vmatprep.subr.mxu0 0.0
    %878 = vmatpush1.msra.mxu0 %v866
    %879 = vmatprep.subr.mxu0 0.0
    %880 = vmatpush1.msra.mxu0 %v865
    %881 = vmatprep.subr.mxu0 0.0
    %882 = vmatpush1.msra.mxu0 %v864
    %883 = vmatprep.subr.mxu0 0.0
    %884 = vmatpush1.msra.mxu0 %v863
    %885 = vmatprep.subr.mxu0 0.0
    %886 = vmatpush1.msra.mxu0 %v862
    %887 = vmatprep.subr.mxu0 0.0
    %888 = vmatpush1.msra.mxu0 %v861
    %889 = vmatprep.subr.mxu0 0.0
    %890 = vmatpush1.msra.mxu0 %v860
    %891 = vmatprep.subr.mxu0 0.0
    %892 = vmatpush1.msra.mxu0 %v859
    %893 = vmatprep.subr.mxu0 0.0
    %894 = vmatpush1.msra.mxu0 %v858
    %895 = vmatprep.subr.mxu0 0.0
    %896 = vmatpush1.msra.mxu0 %v857
    %897 = vmatprep.subr.mxu0 0.0
    %898 = vmatpush1.msra.mxu0 %v856
    %899 = vmatprep.subr.mxu0 0.0
    %900 = vmatpush1.msra.mxu0 %v855
    %901 = vmatprep.subr.mxu0 0.0
    %902 = vmatpush1.msra.mxu0 %v854
    %903 = vmatprep.subr.mxu0 0.0
    %904 = vmatpush1.msra.mxu0 %v853
    %905 = vmatprep.subr.mxu0 0.0
    %906 = vmatpush1.msra.mxu0 %v852
    %907 = vmatprep.subr.mxu0 0.0
    %908 = vmatpush2.msra.mxu0 0.0
    %909 = vmatprep.subr.mxu0 0.0
    %910 = vmatpush2.msra.mxu0 0.0
    %911 = vmatprep.subr.mxu0 0.0
    %912 = vmatpush2.msra.mxu0 0.0
    %913 = vmatprep.subr.mxu0 0.0
    %914 = vmatpush2.msra.mxu0 0.0
    %915 = vmatprep.subr.mxu0 0.0
    %916 = vmatpush2.msra.mxu0 0.0
    %917 = vmatprep.subr.mxu0 0.0
    %918 = vmatpush2.msra.mxu0 0.0
    %919 = vmatprep.subr.mxu0 0.0
    %920 = vmatpush2.msra.mxu0 0.0
    %921 = vmatprep.subr.mxu0 0.0
    %922 = vmatpush2.msra.mxu0 0.0
    %923 = vmatprep.subr.mxu0 0.0
    %924 = vmatpush2.msra.mxu0 0.0
    %925 = vmatprep.subr.mxu0 0.0
    %926 = vmatpush2.msra.mxu0 0.0
    %927 = vmatprep.subr.mxu0 0.0
    %928 = vmatpush2.msra.mxu0 0.0
    %929 = vmatprep.subr.mxu0 0.0
    %930 = vmatpush2.msra.mxu0 0.0
    %931 = vmatprep.subr.mxu0 0.0
    %932 = vmatpush2.msra.mxu0 0.0
    %933 = vmatprep.subr.mxu0 0.0
    %934 = vmatpush2.msra.mxu0 0.0
    %935 = vmatprep.subr.mxu0 0.0
    %936 = vmatpush2.msra.mxu0 0.0
    %937 = vmatprep.subr.mxu0 0.0
    %938 = vmatpush2.msra.mxu0 0.0
    %939 = vmatprep.mubr.f32.mxu0 0.0
    %940 = vmatmul.mubr.f32.gmra.mxu0 %v849
    %v941 = vpop.f32.mrf.mxu0
    %v942 = vadd.f32 %v873, %v941
    %v943 = vpop.f32.mrf.mxu0
    %944 = vdwg.mxu0
    %v945 = vmul.f32 %v942, 0.5
    %v946 = vmul.f32 %v942, 0.044715
    %v947 = vmul.f32 %v946, %v942
    %v948 = vmul.f32 %v947, %v942
    %v949 = vadd.f32 %v942, %v948
    %v950 = vmul.f32 %v949, 0.7978846
    %v951 = vtanh.pop %v950
    %v952 = vadd.f32 %v951, 1.0
    %v953 = vmul.f32 %v945, %v952
    %v954 = vld [vmem:[#allocation11] sm:$0xff]
    %v955 = vld [vmem:[#allocation11 + $0x8] sm:$0xff]
    %v956 = vld [vmem:[#allocation11 + $0x10] sm:$0xff]
    %v957 = vld [vmem:[#allocation11 + $0x18] sm:$0xff]
    %v958 = vld [vmem:[#allocation11 + $0x20] sm:$0xff]
    %v959 = vld [vmem:[#allocation11 + $0x28] sm:$0xff]
    %v960 = vld [vmem:[#allocation11 + $0x30] sm:$0xff]
    %v961 = vld [vmem:[#allocation11 + $0x38] sm:$0xff]
    %v962 = vld [vmem:[#allocation11 + $0x40] sm:$0xff]
    %v963 = vld [vmem:[#allocation11 + $0x48] sm:$0xff]
    %v964 = vld [vmem:[#allocation11 + $0x50] sm:$0xff]
    %v965 = vld [vmem:[#allocation11 + $0x58] sm:$0xff]
    %v966 = vld [vmem:[#allocation11 + $0x60] sm:$0xff]
    %v967 = vld [vmem:[#allocation11 + $0x68] sm:$0xff]
    %v968 = vld [vmem:[#allocation11 + $0x70] sm:$0xff]
    %v969 = vld [vmem:[#allocation11 + $0x78] sm:$0xff]
    %v970 = vld [vmem:[%s8] sm:$0x1]
    %v972 = vlaneseq
    %v973 = vshrl.u32 %v972, 7
    %v974 = vsub.s32 0, %v973
    %v975 = vrot.slane %v970, %v974
    %977 = vmatprep.subr.mxu0 0.0
    %978 = vmatpush1.msra.mxu0 %v969
    %979 = vmatprep.subr.mxu0 0.0
    %980 = vmatpush1.msra.mxu0 %v968
    %981 = vmatprep.subr.mxu0 0.0
    %982 = vmatpush1.msra.mxu0 %v967
    %983 = vmatprep.subr.mxu0 0.0
    %984 = vmatpush1.msra.mxu0 %v966
    %985 = vmatprep.subr.mxu0 0.0
    %986 = vmatpush1.msra.mxu0 %v965
    %987 = vmatprep.subr.mxu0 0.0
    %988 = vmatpush1.msra.mxu0 %v964
    %989 = vmatprep.subr.mxu0 0.0
    %990 = vmatpush1.msra.mxu0 %v963
    %991 = vmatprep.subr.mxu0 0.0
    %992 = vmatpush1.msra.mxu0 %v962
    %993 = vmatprep.subr.mxu0 0.0
    %994 = vmatpush1.msra.mxu0 %v961
    %995 = vmatprep.subr.mxu0 0.0
    %996 = vmatpush1.msra.mxu0 %v960
    %997 = vmatprep.subr.mxu0 0.0
    %998 = vmatpush1.msra.mxu0 %v959
    %999 = vmatprep.subr.mxu0 0.0
    %1000 = vmatpush1.msra.mxu0 %v958
    %1001 = vmatprep.subr.mxu0 0.0
    %1002 = vmatpush1.msra.mxu0 %v957
    %1003 = vmatprep.subr.mxu0 0.0
    %1004 = vmatpush1.msra.mxu0 %v956
    %1005 = vmatprep.subr.mxu0 0.0
    %1006 = vmatpush1.msra.mxu0 %v955
    %1007 = vmatprep.subr.mxu0 0.0
    %1008 = vmatpush1.msra.mxu0 %v954
    %1009 = vmatprep.subr.mxu0 0.0
    %1010 = vmatpush2.msra.mxu0 0.0
    %1011 = vmatprep.subr.mxu0 0.0
    %1012 = vmatpush2.msra.mxu0 0.0
    %1013 = vmatprep.subr.mxu0 0.0
    %1014 = vmatpush2.msra.mxu0 0.0
    %1015 = vmatprep.subr.mxu0 0.0
    %1016 = vmatpush2.msra.mxu0 0.0
    %1017 = vmatprep.subr.mxu0 0.0
    %1018 = vmatpush2.msra.mxu0 0.0
    %1019 = vmatprep.subr.mxu0 0.0
    %1020 = vmatpush2.msra.mxu0 0.0
    %1021 = vmatprep.subr.mxu0 0.0
    %1022 = vmatpush2.msra.mxu0 0.0
    %1023 = vmatprep.subr.mxu0 0.0
    %1024 = vmatpush2.msra.mxu0 0.0
    %1025 = vmatprep.subr.mxu0 0.0
    %1026 = vmatpush2.msra.mxu0 0.0
    %1027 = vmatprep.subr.mxu0 0.0
    %1028 = vmatpush2.msra.mxu0 0.0
    %1029 = vmatprep.subr.mxu0 0.0
    %1030 = vmatpush2.msra.mxu0 0.0
    %1031 = vmatprep.subr.mxu0 0.0
    %1032 = vmatpush2.msra.mxu0 0.0
    %1033 = vmatprep.subr.mxu0 0.0
    %1034 = vmatpush2.msra.mxu0 0.0
    %1035 = vmatprep.subr.mxu0 0.0
    %1036 = vmatpush2.msra.mxu0 0.0
    %1037 = vmatprep.subr.mxu0 0.0
    %1038 = vmatpush2.msra.mxu0 0.0
    %1039 = vmatprep.subr.mxu0 0.0
    %1040 = vmatpush2.msra.mxu0 0.0
    %1041 = vmatprep.mubr.f32.mxu0 0.0
    %1042 = vmatmul.mubr.f32.gmra.mxu0 %v953
    %v1043 = vpop.f32.mrf.mxu0
    %v1044 = vadd.f32 %v975, %v1043
    %v1045 = vpop.f32.mrf.mxu0
    %1046 = vdwg.mxu0
    %1047 = vst [vmem:[#allocation14] sm:$0x3f] %v1044
    // Predicated region
    $region62: #{tpu_custom_call.1} parent=1 // pred_check
      _
    $region63: #{tpu_custom_call.1} parent=1 // pred_check_branch
      %1049 = sbr.rel (0) target = $region65
    $region64: #{tpu_custom_call.1} parent=1 // pred_region
      %s1051 = ssub.s32 64, 64
      %1052 = vsyncadd [#allocation4], %s1051
      %s1054 = sshll.u32 [#allocation13], 4
      %s1055 = int_to_ptr.vmem [resolvable:$true] %s1054
      %1057 = dma.vmem_to_hbm [thread:$0]  %s1055, 64, %s9, [#allocation4]
    $region65: #{tpu_custom_call.1} parent=1 // pred_fallthru
      _
    // Predicated region
    $region66: #{tpu_custom_call.1} parent=1 // pred_check
      _
    $region67: #{tpu_custom_call.1} parent=1 // pred_check_branch
      %1059 = sbr.rel (0) target = $region69
    $region68: #{tpu_custom_call.1} parent=1 // pred_region
      %s1061 = ssub.s32 128, 128
      %1062 = vsyncadd [#allocation15], %s1061
      %s1064 = sshll.u32 [#allocation14], 4
      %s1065 = int_to_ptr.vmem [resolvable:$true] %s1064
      %1067 = dma.vmem_to_hbm [thread:$0]  %s1065, 128, %s10, [#allocation15]
    $region69: #{tpu_custom_call.1} parent=1 // pred_fallthru
      _
    // Predicated region
    $region70: #{tpu_custom_call.1} parent=1 // pred_check
      _
    $region71: #{tpu_custom_call.1} parent=1 // pred_check_branch
      %1069 = sbr.rel (0) target = $region73
    $region72: #{tpu_custom_call.1} parent=1 // pred_region
      %1070 = dma.done [#allocation4], 64
    $region73: #{tpu_custom_call.1} parent=1 // pred_fallthru
      _
    // Predicated region
    $region74: #{tpu_custom_call.1} parent=1 // pred_check
      _
    $region75: #{tpu_custom_call.1} parent=1 // pred_check_branch
      %1072 = sbr.rel (0) target = $region77
    $region76: #{tpu_custom_call.1} parent=1 // pred_region
      %1073 = dma.done [#allocation15], 128
    $region77: #{tpu_custom_call.1} parent=1 // pred_fallthru
      _
    %1074 = vsyncpa [#allocation3], 1
    %1075 = vsyncpa [#allocation6], 1
    %1076 = vsyncpa [#allocation9], 1
    %1077 = vsyncpa [#allocation12], 1
    %1078 = vsyncpa [#allocation4], 1
    %1079 = vsyncpa [#allocation15], 1

</llo_original>
